<compile_context>
chip_gen: v7x
topology: tpu7x:2x2x1
jax: 0.10.0
libtpu: 0.0.40
codegen_flags: <defaults>
</compile_context>

<pallas_src>
import functools

import jax
import jax.numpy as jnp
from jax import lax
from jax.experimental import pallas as pl
from jax.experimental.pallas import tpu as pltpu


def blaze_block_kernel(x_ref, wm_ref, wc_ref, b_ref, o_ref, *, ksize, W):
    """One lane-tile (PT packed image pairs) per grid step.

    x_ref : (2*Cin, TL)        packed input tile (image pair on sublanes,
                               pairs x flattened H*W on lanes)
    wm_ref: (K*K, 2*Cin, TL)   per-tap depthwise weights with the "same"
                               zero-padding boundary mask folded in
    wc_ref: (2*Cout, 4*Cin)    pointwise weight + identity skip, block-diagonal
                               over the image pair
    b_ref : (2*Cout, 1)        pointwise bias with the depthwise bias folded in
    o_ref : (2*Cout, TL)       packed output tile
    """
    TL = x_ref.shape[-1]
    pad = (ksize - 1) // 2
    center = pad * ksize + pad

    x = x_ref[...].astype(jnp.float32)

    # ---- depthwise KxK, stride 1: lane rolls (XLU) * pre-masked weights (VPU)
    acc = x * wm_ref[center]
    for kh in range(ksize):
        for kw in range(ksize):
            t = kh * ksize + kw
            if t == center:
                continue
            delta = (kh - pad) * W + (kw - pad)
            # src[l] = x[l + delta]; lanes whose in-image neighbour would be
            # out of bounds (incl. any cross-image / wrap-around lanes) are
            # zeroed because the mask is folded into wm_ref[t].
            src = pltpu.roll(x, (-delta) % TL, axis=1)
            acc = acc + src * wm_ref[t]
    # TODO(synk): if a bundle dump shows the rolls XLU-bound on v6e, try
    # lane-offset loads from a zero-padded VMEM scratch instead of rolls.

    # ---- pointwise 1x1 + channel-padded residual + bias on the (idle) MXU ---
    stacked = jnp.concatenate([acc, x], axis=0)                 # (4*Cin, TL)
    out = jnp.dot(wc_ref[...], stacked, preferred_element_type=jnp.float32)
    out = out + b_ref[...]                                      # once per step
    o_ref[...] = jnp.maximum(out, 0.0).astype(o_ref.dtype)


def _pick_pairs_per_tile(num_pairs, Cin, Cout, HW, ksize, itemsize,
                         vmem_budget_bytes=4 * 1024 * 1024):
    """Pairs-of-images per lane tile: small VMEM footprint, grid >= 2 if possible."""
    # Double-buffered in+out tiles plus the resident masked-tap weights (f32).
    per_pair = (2 * 2 * (2 * Cin + 2 * Cout) * itemsize
                + ksize * ksize * 2 * Cin * 4) * HW
    cap = max(1, vmem_budget_bytes // max(per_pair, 1))
    if num_pairs >= 2:
        cap = min(cap, num_pairs // 2)   # >= 2 grid steps for v7x's 2 TCs
    best = num_pairs                      # fallback: single full-extent tile
    for d in range(1, num_pairs + 1):
        if num_pairs % d != 0 or d > cap:
            continue
        # Lane-tiled blocks must be 128-aligned unless they span the full axis.
        if d != num_pairs and (d * HW) % 128 != 0:
            continue
        best = d                          # keep the largest admissible divisor
    return best


def blaze_block(x_nchw, params, *, kernel_size=3, stride=1):
    """Pallas implementation of BlazeBlock.forward (stride=1 path)."""
    if stride != 1:
        # TODO(synk): stride=2 path (max-pool skip + strided depthwise conv).
        raise NotImplementedError("Only the default stride=1 path is implemented.")
    if kernel_size % 2 != 1:
        raise NotImplementedError("Odd kernel_size only ('same' padding).")
    w_dw, b_dw, w_pw, b_pw = params            # PyTorch Conv2d weight layouts
    N, Cin, H, W = x_nchw.shape
    Cout = w_pw.shape[0]
    if Cout < Cin:
        raise NotImplementedError("BlazeBlock assumes out_channels >= in_channels.")
    K = kernel_size
    pad = (K - 1) // 2
    assert pad < H and pad < W, "kernel radius must be smaller than the image"
    HW = H * W
    f32 = jnp.float32

    # ---- pack two images per sublane tile (reshapes + one tiny transpose) ----
    x = x_nchw.reshape(N, Cin, HW)
    Npad = N + (N % 2)
    if Npad != N:
        x = jnp.concatenate([x, jnp.zeros((1, Cin, HW), x.dtype)], axis=0)
    num_pairs = Npad // 2
    # x_packed[e*Cin + ci, p*HW + hw] = x[2p + e, ci, hw]
    x_packed = (x.reshape(num_pairs, 2, Cin, HW)
                 .transpose(1, 2, 0, 3)
                 .reshape(2 * Cin, num_pairs * HW))

    # ---- weight prep (tiny, done once by XLA outside the kernel) ----
    wdw = w_dw[:, 0, :, :].reshape(Cin, K * K).astype(f32)     # (Cin, K*K)
    wpw = w_pw[:, :, 0, 0].astype(f32)                         # (Cout, Cin)
    # Fold the depthwise bias:  Wpw @ (dw(x)+b_dw) + b_pw == Wpw@dw(x) + bias
    bias = b_pw.astype(f32) + wpw @ b_dw.astype(f32)           # (Cout,)
    b_packed = jnp.tile(bias, 2).reshape(2 * Cout, 1)          # (2*Cout, 1)

    # Pointwise + identity (channel zero-pad) skip as one block-diag MXU weight.
    eye2 = jnp.eye(2, dtype=f32)
    skip = jnp.eye(Cout, Cin, dtype=f32)
    wc = jnp.concatenate([jnp.kron(eye2, wpw), jnp.kron(eye2, skip)],
                         axis=1)                               # (2*Cout, 4*Cin)

    PT = _pick_pairs_per_tile(num_pairs, Cin, Cout, HW, K, x.dtype.itemsize)
    TL = PT * HW

    # Per-tap depthwise weights with the boundary mask folded in (per image,
    # tiled over the pairs in one lane tile). Kept VMEM-resident (constant
    # block index) across all grid steps.
    flat = jnp.arange(HW, dtype=jnp.int32)
    row, col = flat // W, flat % W
    wdw2 = jnp.concatenate([wdw, wdw], axis=0)                 # (2*Cin, K*K)
    wm_taps = []
    for kh in range(K):
        dh = kh - pad
        for kw in range(K):
            dw = kw - pad
            valid = ((row + dh >= 0) & (row + dh < H)
                     & (col + dw >= 0) & (col + dw < W)).astype(f32)  # (HW,)
            wm_taps.append(wdw2[:, kh * K + kw][:, None] * valid[None, :])
    wm = jnp.stack(wm_taps, axis=0)                            # (K*K, 2*Cin, HW)
    wm = jnp.tile(wm, (1, 1, PT))                              # (K*K, 2*Cin, TL)

    kern = functools.partial(blaze_block_kernel, ksize=K, W=W)

    out_packed = pl.pallas_call(
        kern,
        out_shape=jax.ShapeDtypeStruct((2 * Cout, num_pairs * HW), x_nchw.dtype),
        grid_spec=pltpu.PrefetchScalarGridSpec(
            num_scalar_prefetch=0,
            grid=(num_pairs // PT,),
            in_specs=[
                pl.BlockSpec((2 * Cin, TL), lambda i: (0, i)),
                pl.BlockSpec((K * K, 2 * Cin, TL), lambda i: (0, 0, 0)),
                pl.BlockSpec((2 * Cout, 4 * Cin), lambda i: (0, 0)),
                pl.BlockSpec((2 * Cout, 1), lambda i: (0, 0)),
            ],
            out_specs=pl.BlockSpec((2 * Cout, TL), lambda i: (0, i)),
        ),
        # TODO(synk): when num_pairs == 1 (tiny batch) add a second parallel
        # grid axis over spatial tiles (with halo) so both v7x TensorCores get
        # work; re-derive tile/VMEM budgets against its 64 MiB VMEM.
        compiler_params=pltpu.CompilerParams(
            dimension_semantics=("parallel",),
            vmem_limit_bytes=32 * 1024 * 1024,
        ),
    )(x_packed, wm, wc, b_packed)

    # Unpack: (2*Cout, num_pairs*HW) -> (Npad, Cout, H, W), drop batch padding.
    out = (out_packed.reshape(2, Cout, num_pairs, HW)
           .transpose(2, 0, 1, 3)
           .reshape(Npad, Cout, H, W))
    return out[:N]


def blaze_block_ref(x, params, kernel_size=3):
    """Pure-JAX reference mirroring the PyTorch module (stride=1)."""
    w_dw, b_dw, w_pw, b_pw = params
    N, Cin, H, W = x.shape
    Cout = w_pw.shape[0]
    pad = (kernel_size - 1) // 2
    h = lax.conv_general_dilated(
        x, w_dw, window_strides=(1, 1), padding=[(pad, pad), (pad, pad)],
        dimension_numbers=("NCHW", "OIHW", "NCHW"), feature_group_count=Cin)
    h = h + b_dw.reshape(1, Cin, 1, 1)
    h = lax.conv_general_dilated(
        h, w_pw, window_strides=(1, 1), padding="VALID",
        dimension_numbers=("NCHW", "OIHW", "NCHW"))
    h = h + b_pw.reshape(1, Cout, 1, 1)
    skip = jnp.pad(x, ((0, 0), (0, max(Cout - Cin, 0)), (0, 0), (0, 0)))
    return jnp.maximum(h + skip, 0.0)


if __name__ == "__main__":
    # Small shapes consistent with the module: N=2, Cin=4, Cout=8, 16x16 spatial.
    N, Cin, Cout, H, W, K = 2, 4, 8, 16, 16, 3

    key = jax.random.PRNGKey(0)
    kx, k1, k2, k3, k4 = jax.random.split(key, 5)

    x = jax.random.normal(kx, (N, Cin, H, W), dtype=jnp.float32)
    # Deterministic parameter init (PyTorch Conv2d weight shapes).
    w_dw = 0.2 * jax.random.normal(k1, (Cin, 1, K, K), dtype=jnp.float32)   # groups=Cin
    b_dw = 0.1 * jax.random.normal(k2, (Cin,), dtype=jnp.float32)
    w_pw = 0.2 * jax.random.normal(k3, (Cout, Cin, 1, 1), dtype=jnp.float32)
    b_pw = 0.1 * jax.random.normal(k4, (Cout,), dtype=jnp.float32)
    params = (w_dw, b_dw, w_pw, b_pw)

    out = blaze_block(x, params, kernel_size=K, stride=1)
    out = jax.block_until_ready(out)

    ref = jax.block_until_ready(blaze_block_ref(x, params, kernel_size=K))
    assert out.shape == (N, Cout, H, W)
    assert jnp.allclose(out, ref, atol=1e-4, rtol=1e-4), "mismatch vs reference"

    print("KERNEL_OK")
</pallas_src>

<mosaic_0001>
module attributes {stable_mosaic.version = 11 : i64} {
  func.func @blaze_block_kernel(%arg0: i32, %arg1: memref<8x256xf32, #tpu.memory_space<vmem>>, %arg2: memref<9x8x256xf32, #tpu.memory_space<vmem>>, %arg3: memref<16x16xf32, #tpu.memory_space<vmem>>, %arg4: memref<16x1xf32, #tpu.memory_space<vmem>>, %arg5: memref<16x256xf32, #tpu.memory_space<vmem>>) attributes {dimension_semantics = [#tpu.dimension_semantics<parallel>], iteration_bounds = array<i64: 1>, scalar_prefetch = 0 : i64, scratch_operands = 0 : i64, tpu.core_type = #tpu.core_type<tc>, window_params = [{transform_indices = @transform_0, window_bounds = array<i64: 8, 256>}, {pipeline_mode = #tpu.pipeline_mode<synchronous>, transform_indices = @transform_1, window_bounds = array<i64: 9, 8, 256>}, {pipeline_mode = #tpu.pipeline_mode<synchronous>, transform_indices = @transform_2, window_bounds = array<i64: 16, 16>}, {pipeline_mode = #tpu.pipeline_mode<synchronous>, transform_indices = @transform_3, window_bounds = array<i64: 16, 1>}, {transform_indices = @transform_4, window_bounds = array<i64: 16, 256>}]} {
    %c0 = arith.constant 0 : index
    %c0_0 = arith.constant 0 : index
    %0 = vector.load %arg1[%c0, %c0_0] : memref<8x256xf32, #tpu.memory_space<vmem>>, vector<8x256xf32>
    %c4 = arith.constant 4 : index
    %c0_1 = arith.constant 0 : index
    %c0_2 = arith.constant 0 : index
    %1 = vector.load %arg2[%c4, %c0_1, %c0_2] : memref<9x8x256xf32, #tpu.memory_space<vmem>>, vector<1x8x256xf32>
    %2 = vector.shape_cast %1 : vector<1x8x256xf32> to vector<8x256xf32>
    %3 = arith.mulf %0, %2 : vector<8x256xf32>
    %c17_i32 = arith.constant 17 : i32
    %4 = tpu.dynamic_rotate %0 by %c17_i32 dim 1 : vector<8x256xf32>, i32 -> vector<8x256xf32>
    %c0_3 = arith.constant 0 : index
    %c0_4 = arith.constant 0 : index
    %c0_5 = arith.constant 0 : index
    %5 = vector.load %arg2[%c0_3, %c0_4, %c0_5] : memref<9x8x256xf32, #tpu.memory_space<vmem>>, vector<1x8x256xf32>
    %6 = vector.shape_cast %5 : vector<1x8x256xf32> to vector<8x256xf32>
    %7 = arith.mulf %4, %6 : vector<8x256xf32>
    %8 = arith.addf %3, %7 : vector<8x256xf32>
    %c16_i32 = arith.constant 16 : i32
    %9 = tpu.dynamic_rotate %0 by %c16_i32 dim 1 : vector<8x256xf32>, i32 -> vector<8x256xf32>
    %c1 = arith.constant 1 : index
    %c0_6 = arith.constant 0 : index
    %c0_7 = arith.constant 0 : index
    %10 = vector.load %arg2[%c1, %c0_6, %c0_7] : memref<9x8x256xf32, #tpu.memory_space<vmem>>, vector<1x8x256xf32>
    %11 = vector.shape_cast %10 : vector<1x8x256xf32> to vector<8x256xf32>
    %12 = arith.mulf %9, %11 : vector<8x256xf32>
    %13 = arith.addf %8, %12 : vector<8x256xf32>
    %c15_i32 = arith.constant 15 : i32
    %14 = tpu.dynamic_rotate %0 by %c15_i32 dim 1 : vector<8x256xf32>, i32 -> vector<8x256xf32>
    %c2 = arith.constant 2 : index
    %c0_8 = arith.constant 0 : index
    %c0_9 = arith.constant 0 : index
    %15 = vector.load %arg2[%c2, %c0_8, %c0_9] : memref<9x8x256xf32, #tpu.memory_space<vmem>>, vector<1x8x256xf32>
    %16 = vector.shape_cast %15 : vector<1x8x256xf32> to vector<8x256xf32>
    %17 = arith.mulf %14, %16 : vector<8x256xf32>
    %18 = arith.addf %13, %17 : vector<8x256xf32>
    %c1_i32 = arith.constant 1 : i32
    %19 = tpu.dynamic_rotate %0 by %c1_i32 dim 1 : vector<8x256xf32>, i32 -> vector<8x256xf32>
    %c3 = arith.constant 3 : index
    %c0_10 = arith.constant 0 : index
    %c0_11 = arith.constant 0 : index
    %20 = vector.load %arg2[%c3, %c0_10, %c0_11] : memref<9x8x256xf32, #tpu.memory_space<vmem>>, vector<1x8x256xf32>
    %21 = vector.shape_cast %20 : vector<1x8x256xf32> to vector<8x256xf32>
    %22 = arith.mulf %19, %21 : vector<8x256xf32>
    %23 = arith.addf %18, %22 : vector<8x256xf32>
    %c255_i32 = arith.constant 255 : i32
    %24 = tpu.dynamic_rotate %0 by %c255_i32 dim 1 : vector<8x256xf32>, i32 -> vector<8x256xf32>
    %c5 = arith.constant 5 : index
    %c0_12 = arith.constant 0 : index
    %c0_13 = arith.constant 0 : index
    %25 = vector.load %arg2[%c5, %c0_12, %c0_13] : memref<9x8x256xf32, #tpu.memory_space<vmem>>, vector<1x8x256xf32>
    %26 = vector.shape_cast %25 : vector<1x8x256xf32> to vector<8x256xf32>
    %27 = arith.mulf %24, %26 : vector<8x256xf32>
    %28 = arith.addf %23, %27 : vector<8x256xf32>
    %c241_i32 = arith.constant 241 : i32
    %29 = tpu.dynamic_rotate %0 by %c241_i32 dim 1 : vector<8x256xf32>, i32 -> vector<8x256xf32>
    %c6 = arith.constant 6 : index
    %c0_14 = arith.constant 0 : index
    %c0_15 = arith.constant 0 : index
    %30 = vector.load %arg2[%c6, %c0_14, %c0_15] : memref<9x8x256xf32, #tpu.memory_space<vmem>>, vector<1x8x256xf32>
    %31 = vector.shape_cast %30 : vector<1x8x256xf32> to vector<8x256xf32>
    %32 = arith.mulf %29, %31 : vector<8x256xf32>
    %33 = arith.addf %28, %32 : vector<8x256xf32>
    %c240_i32 = arith.constant 240 : i32
    %34 = tpu.dynamic_rotate %0 by %c240_i32 dim 1 : vector<8x256xf32>, i32 -> vector<8x256xf32>
    %c7 = arith.constant 7 : index
    %c0_16 = arith.constant 0 : index
    %c0_17 = arith.constant 0 : index
    %35 = vector.load %arg2[%c7, %c0_16, %c0_17] : memref<9x8x256xf32, #tpu.memory_space<vmem>>, vector<1x8x256xf32>
    %36 = vector.shape_cast %35 : vector<1x8x256xf32> to vector<8x256xf32>
    %37 = arith.mulf %34, %36 : vector<8x256xf32>
    %38 = arith.addf %33, %37 : vector<8x256xf32>
    %c239_i32 = arith.constant 239 : i32
    %39 = tpu.dynamic_rotate %0 by %c239_i32 dim 1 : vector<8x256xf32>, i32 -> vector<8x256xf32>
    %c8 = arith.constant 8 : index
    %c0_18 = arith.constant 0 : index
    %c0_19 = arith.constant 0 : index
    %40 = vector.load %arg2[%c8, %c0_18, %c0_19] : memref<9x8x256xf32, #tpu.memory_space<vmem>>, vector<1x8x256xf32>
    %41 = vector.shape_cast %40 : vector<1x8x256xf32> to vector<8x256xf32>
    %42 = arith.mulf %39, %41 : vector<8x256xf32>
    %43 = arith.addf %38, %42 : vector<8x256xf32>
    %44 = tpu.concatenate %43, %0 in 0 : vector<8x256xf32>, vector<8x256xf32> -> vector<16x256xf32>
    %c0_20 = arith.constant 0 : index
    %c0_21 = arith.constant 0 : index
    %45 = vector.load %arg3[%c0_20, %c0_21] : memref<16x16xf32, #tpu.memory_space<vmem>>, vector<16x16xf32>
    %cst = arith.constant dense<0.000000e+00> : vector<16x256xf32>
    %46 = tpu.matmul %45, %44, %cst {dimension_numbers = #tpu.dot_dimension_numbers<[1], [0], [0], [1], [0, 0, 1, 1], [], []>} : vector<16x16xf32>, vector<16x256xf32>, vector<16x256xf32> -> vector<16x256xf32>
    %c0_22 = arith.constant 0 : index
    %c0_23 = arith.constant 0 : index
    %47 = vector.load %arg4[%c0_22, %c0_23] : memref<16x1xf32, #tpu.memory_space<vmem>>, vector<16x1xf32>
    %48 = vector.broadcast %47 : vector<16x1xf32> to vector<16x256xf32>
    %49 = arith.addf %46, %48 : vector<16x256xf32>
    %cst_24 = arith.constant 0.000000e+00 : f32
    %50 = vector.broadcast %cst_24 : f32 to vector<16x256xf32>
    %51 = arith.maximumf %49, %50 : vector<16x256xf32>
    %c0_25 = arith.constant 0 : index
    %c0_26 = arith.constant 0 : index
    %52 = vector.load %arg5[%c0_25, %c0_26] : memref<16x256xf32, #tpu.memory_space<vmem>>, vector<16x256xf32>
    tpu.vector_store %arg5[%c0_25, %c0_26], %51 {strides = array<i32>} : memref<16x256xf32, #tpu.memory_space<vmem>>, vector<16x256xf32>,
    return
  }
  func.func @transform_0(%arg0: i32) -> (i32, i32) {
    %c0_i32 = arith.constant 0 : i32
    %c0_i32_0 = arith.constant 0 : i32
    return %c0_i32, %arg0 : i32, i32
  }
  func.func @transform_1(%arg0: i32) -> (i32, i32, i32) {
    %c0_i32 = arith.constant 0 : i32
    %c0_i32_0 = arith.constant 0 : i32
    %c0_i32_1 = arith.constant 0 : i32
    %c0_i32_2 = arith.constant 0 : i32
    return %c0_i32, %c0_i32_0, %c0_i32_1 : i32, i32, i32
  }
  func.func @transform_2(%arg0: i32) -> (i32, i32) {
    %c0_i32 = arith.constant 0 : i32
    %c0_i32_0 = arith.constant 0 : i32
    %c0_i32_1 = arith.constant 0 : i32
    return %c0_i32, %c0_i32_0 : i32, i32
  }
  func.func @transform_3(%arg0: i32) -> (i32, i32) {
    %c0_i32 = arith.constant 0 : i32
    %c0_i32_0 = arith.constant 0 : i32
    %c0_i32_1 = arith.constant 0 : i32
    return %c0_i32, %c0_i32_0 : i32, i32
  }
  func.func @transform_4(%arg0: i32) -> (i32, i32) {
    %c0_i32 = arith.constant 0 : i32
    %c0_i32_0 = arith.constant 0 : i32
    return %c0_i32, %arg0 : i32, i32
  }
}

</mosaic_0001>

<llo_original>
// kernel: tpu_custom_call.1
$region0: #{tpu_custom_call.1}
  #allocation0 [shape = 'u32[]', space=smem, size = 0x4, offset = 0x4, fixed_abs, tag = 'smem constant byte address 0x4 - core index']
  #allocation1 [shape = 'u32[144,128]{1,0:T(1,128)}', space=vmem, size = 0x12000, scoped, tag = 'internal scratch']
  %s0 = inlined_call_operand.vmem [shape: f32[8,256], index: 0, kind: input, shape index: {}]
  %s1 = inlined_call_operand.hbm [shape: f32[9,8,256], index: 1, kind: input, shape index: {}]
  %s2 = inlined_call_operand.hbm [shape: f32[16,16], index: 2, kind: input, shape index: {}]
  %s3 = inlined_call_operand.vmem [shape: f32[16,1], index: 3, kind: input, shape index: {}]
  %s4 = inlined_call_operand.hbm [shape: f32[16,256], index: 4, kind: output, shape index: {}]
  %s5 = sld [smem:[#allocation0]]
  $region34: #{tpu_custom_call.1} parent=0
    _
  %s7 = ssub.s32 1, %s5
  %s8 = scalar_select 0, %s7, %s5
  $region1: #{tpu_custom_call.1} parent=0
    #allocation2 [shape = 'u8[73728]{0}', space=vmem, size = 0x12000, scoped, tag = 'input window, operand 1, single buffered']
    #allocation3 [shape = 's32[1]{0}', space=sflag, size = 0x4, scoped, tag = 'scoped memory for tpu_custom_call.1']
    #allocation4 [shape = 's32[1]{0}', space=sflag, size = 0x4, scoped, tag = 'scoped memory for tpu_custom_call.1']
    #allocation5 [shape = 'u8[8192]{0}', space=vmem, size = 0x2000, scoped, tag = 'input window, operand 2, single buffered']
    #allocation6 [shape = 's32[1]{0}', space=sflag, size = 0x4, scoped, tag = 'scoped memory for tpu_custom_call.1']
    #allocation7 [shape = 'u8[16384]{0}', space=vmem, size = 0x4000, scoped, tag = 'output window, operand 0, single buffered']
    %9 = vsyncpa [#allocation3], 0
    %10 = vsyncpa [#allocation6], 0
    %11 = vsyncpa [#allocation4], 0
    // Predicated region
    $region2: #{tpu_custom_call.1} parent=1 // pred_check
      _
    $region3: #{tpu_custom_call.1} parent=1 // pred_check_branch
      %13 = sbr.rel (0) target = $region5
    $region4: #{tpu_custom_call.1} parent=1 // pred_region
      _
    $region5: #{tpu_custom_call.1} parent=1 // pred_fallthru
      _
    // Predicated region
    $region6: #{tpu_custom_call.1} parent=1 // pred_check
      _
    $region7: #{tpu_custom_call.1} parent=1 // pred_check_branch
      %15 = sbr.rel (0) target = $region9
    $region8: #{tpu_custom_call.1} parent=1 // pred_region
      %s17 = ssub.s32 2304, 2304
      %18 = vsyncadd [#allocation3], %s17
      %s19 = sshll.u32 [#allocation2], 4
      %s20 = int_to_ptr.vmem [resolvable:$true] %s19
      %25 = dma.hbm_to_vmem [thread:$0]  %s1, 2304, %s20, [#allocation3], 256, 256, 16
    $region9: #{tpu_custom_call.1} parent=1 // pred_fallthru
      _
    // Predicated region
    $region10: #{tpu_custom_call.1} parent=1 // pred_check
      _
    $region11: #{tpu_custom_call.1} parent=1 // pred_check_branch
      %27 = sbr.rel (0) target = $region13
    $region12: #{tpu_custom_call.1} parent=1 // pred_region
      %s29 = ssub.s32 256, 256
      %30 = vsyncadd [#allocation6], %s29
      %s31 = sshll.u32 [#allocation5], 4
      %s32 = int_to_ptr.vmem [resolvable:$true] %s31
      %37 = dma.hbm_to_vmem [thread:$0]  %s2, 256, %s32, [#allocation6], 128, 128, 8
    $region13: #{tpu_custom_call.1} parent=1 // pred_fallthru
      _
    // Predicated region
    $region14: #{tpu_custom_call.1} parent=1 // pred_check
      _
    $region15: #{tpu_custom_call.1} parent=1 // pred_check_branch
      %39 = sbr.rel (0) target = $region17
    $region16: #{tpu_custom_call.1} parent=1 // pred_region
      _
    $region17: #{tpu_custom_call.1} parent=1 // pred_fallthru
      _
    // Predicated region
    $region18: #{tpu_custom_call.1} parent=1 // pred_check
      _
    $region19: #{tpu_custom_call.1} parent=1 // pred_check_branch
      %41 = sbr.rel (0) target = $region21
    $region20: #{tpu_custom_call.1} parent=1 // pred_region
      %42 = dma.done [#allocation3], 2304
    $region21: #{tpu_custom_call.1} parent=1 // pred_fallthru
      _
    // Predicated region
    $region22: #{tpu_custom_call.1} parent=1 // pred_check
      _
    $region23: #{tpu_custom_call.1} parent=1 // pred_check_branch
      %44 = sbr.rel (0) target = $region25
    $region24: #{tpu_custom_call.1} parent=1 // pred_region
      %45 = dma.done [#allocation6], 256
    $region25: #{tpu_custom_call.1} parent=1 // pred_fallthru
      _
    %v46 = vld [vmem:[%s0] sm:$0xff]
    %v47 = vld [vmem:[%s0 + $0x8] sm:$0xff]
    %s48 = scalar_lea.vmem [#allocation2], 64
    %v49 = vld [vmem:[%s48] sm:$0xff]
    %v50 = vld [vmem:[%s48 + $0x8] sm:$0xff]
    %v51 = vmul.f32 %v46, %v49
    %v52 = vmul.f32 %v47, %v50
    %53 = vrot.lane.b32.xlu0 %v46, 17
    %v54 = vpop.permute.xlu0 %53
    %55 = vrot.lane.b32.xlu0 %v47, 17
    %v56 = vpop.permute.xlu0 %55
    %v57 = vlaneseq
    %v58 = vand.u32 %v57, 127
    %vm59 = vcmp.lt.s32.totalorder %v58, 17
    %v60 = vsel %vm59, %v54, %v56
    %v61 = vsel %vm59, %v56, %v54
    %v62 = vld [vmem:[#allocation2] sm:$0xff]
    %v63 = vld [vmem:[#allocation2 + $0x8] sm:$0xff]
    %v64 = vmul.f32 %v61, %v62
    %v65 = vmul.f32 %v60, %v63
    %v66 = vadd.f32 %v51, %v64
    %v67 = vadd.f32 %v52, %v65
    %68 = vrot.lane.b32.xlu0 %v46, 16
    %v69 = vpop.permute.xlu0 %68
    %70 = vrot.lane.b32.xlu0 %v47, 16
    %v71 = vpop.permute.xlu0 %70
    %vm72 = vcmp.lt.s32.totalorder %v58, 16
    %v73 = vsel %vm72, %v69, %v71
    %v74 = vsel %vm72, %v71, %v69
    %s75 = scalar_lea.vmem [#allocation2], 16
    %v76 = vld [vmem:[%s75] sm:$0xff]
    %v77 = vld [vmem:[%s75 + $0x8] sm:$0xff]
    %v78 = vmul.f32 %v74, %v76
    %v79 = vmul.f32 %v73, %v77
    %v80 = vadd.f32 %v66, %v78
    %v81 = vadd.f32 %v67, %v79
    %82 = vrot.lane.b32.xlu0 %v46, 15
    %v83 = vpop.permute.xlu0 %82
    %84 = vrot.lane.b32.xlu0 %v47, 15
    %v85 = vpop.permute.xlu0 %84
    %vm86 = vcmp.lt.s32.totalorder %v58, 15
    %v87 = vsel %vm86, %v83, %v85
    %v88 = vsel %vm86, %v85, %v83
    %s89 = scalar_lea.vmem [#allocation2], 32
    %v90 = vld [vmem:[%s89] sm:$0xff]
    %v91 = vld [vmem:[%s89 + $0x8] sm:$0xff]
    %v92 = vmul.f32 %v88, %v90
    %v93 = vmul.f32 %v87, %v91
    %v94 = vadd.f32 %v80, %v92
    %v95 = vadd.f32 %v81, %v93
    %96 = vrot.lane.b32.xlu0 %v46, 1
    %v97 = vpop.permute.xlu0 %96
    %98 = vrot.lane.b32.xlu0 %v47, 1
    %v99 = vpop.permute.xlu0 %98
    %vm100 = vcmp.lt.s32.totalorder %v58, 1
    %v101 = vsel %vm100, %v97, %v99
    %v102 = vsel %vm100, %v99, %v97
    %s103 = scalar_lea.vmem [#allocation2], 48
    %v104 = vld [vmem:[%s103] sm:$0xff]
    %v105 = vld [vmem:[%s103 + $0x8] sm:$0xff]
    %v106 = vmul.f32 %v102, %v104
    %v107 = vmul.f32 %v101, %v105
    %v108 = vadd.f32 %v94, %v106
    %v109 = vadd.f32 %v95, %v107
    %110 = vrot.lane.b32.xlu0 %v46, 127
    %v111 = vpop.permute.xlu0 %110
    %112 = vrot.lane.b32.xlu0 %v47, 127
    %v113 = vpop.permute.xlu0 %112
    %vm114 = vcmp.lt.s32.totalorder %v58, 127
    %v115 = vsel %vm114, %v111, %v113
    %v116 = vsel %vm114, %v113, %v111
    %s117 = scalar_lea.vmem [#allocation2], 80
    %v118 = vld [vmem:[%s117] sm:$0xff]
    %v119 = vld [vmem:[%s117 + $0x8] sm:$0xff]
    %v120 = vmul.f32 %v115, %v118
    %v121 = vmul.f32 %v116, %v119
    %v122 = vadd.f32 %v108, %v120
    %v123 = vadd.f32 %v109, %v121
    %124 = vrot.lane.b32.xlu0 %v46, 113
    %v125 = vpop.permute.xlu0 %124
    %126 = vrot.lane.b32.xlu0 %v47, 113
    %v127 = vpop.permute.xlu0 %126
    %vm128 = vcmp.lt.s32.totalorder %v58, 113
    %v129 = vsel %vm128, %v125, %v127
    %v130 = vsel %vm128, %v127, %v125
    %s131 = scalar_lea.vmem [#allocation2], 96
    %v132 = vld [vmem:[%s131] sm:$0xff]
    %v133 = vld [vmem:[%s131 + $0x8] sm:$0xff]
    %v134 = vmul.f32 %v129, %v132
    %v135 = vmul.f32 %v130, %v133
    %v136 = vadd.f32 %v122, %v134
    %v137 = vadd.f32 %v123, %v135
    %138 = vrot.lane.b32.xlu0 %v46, 112
    %v139 = vpop.permute.xlu0 %138
    %140 = vrot.lane.b32.xlu0 %v47, 112
    %v141 = vpop.permute.xlu0 %140
    %vm142 = vcmp.lt.s32.totalorder %v58, 112
    %v143 = vsel %vm142, %v139, %v141
    %v144 = vsel %vm142, %v141, %v139
    %s145 = scalar_lea.vmem [#allocation2], 112
    %v146 = vld [vmem:[%s145] sm:$0xff]
    %v147 = vld [vmem:[%s145 + $0x8] sm:$0xff]
    %v148 = vmul.f32 %v143, %v146
    %v149 = vmul.f32 %v144, %v147
    %v150 = vadd.f32 %v136, %v148
    %v151 = vadd.f32 %v137, %v149
    %152 = vrot.lane.b32.xlu0 %v46, 111
    %v153 = vpop.permute.xlu0 %152
    %154 = vrot.lane.b32.xlu0 %v47, 111
    %v155 = vpop.permute.xlu0 %154
    %vm156 = vcmp.lt.s32.totalorder %v58, 111
    %v157 = vsel %vm156, %v153, %v155
    %v158 = vsel %vm156, %v155, %v153
    %s159 = scalar_lea.vmem [#allocation2], 128
    %v160 = vld [vmem:[%s159] sm:$0xff]
    %v161 = vld [vmem:[%s159 + $0x8] sm:$0xff]
    %v162 = vmul.f32 %v157, %v160
    %v163 = vmul.f32 %v158, %v161
    %v164 = vadd.f32 %v150, %v162
    %v165 = vadd.f32 %v151, %v163
    %v166 = vld [vmem:[#allocation5] sm:$0xff]
    %v167 = vld [vmem:[#allocation5 + $0x8] sm:$0xff]
    %v168 = vld [vmem:[%s3] sm:$0xff]
    %v169 = vld [vmem:[%s3 + $0x8] sm:$0xff]
    %171 = vset.pattern.permute.xlu0 0
    %172 = vperm.xlu0 %171, %v168
    %v173 = vpop.permute.xlu0 %172
    %176 = vset.pattern.permute.xlu0 0
    %177 = vperm.xlu0 %176, %v169
    %v178 = vpop.permute.xlu0 %177
    %vm180 = vcmask 130048
    %v182 = vsel %vm180, %v166, 0
    %v185 = vsel %vm180, %v167, 0
    %187 = vmatprep.subr.mxu0 %v165
    %188 = vmatpush1.msra.mxu0 %v164
    %189 = vmatprep.subr.mxu0 %v47
    %190 = vmatpush1.msra.mxu0 %v46
    %191 = vmatprep.subr.mxu0 0.0
    %192 = vmatpush1.msra.mxu0 0.0
    %193 = vmatprep.subr.mxu0 0.0
    %194 = vmatpush1.msra.mxu0 0.0
    %195 = vmatprep.subr.mxu0 0.0
    %196 = vmatpush1.msra.mxu0 0.0
    %197 = vmatprep.subr.mxu0 0.0
    %198 = vmatpush1.msra.mxu0 0.0
    %199 = vmatprep.subr.mxu0 0.0
    %200 = vmatpush1.msra.mxu0 0.0
    %201 = vmatprep.subr.mxu0 0.0
    %202 = vmatpush1.msra.mxu0 0.0
    %203 = vmatprep.subr.mxu0 0.0
    %204 = vmatpush1.msra.mxu0 0.0
    %205 = vmatprep.subr.mxu0 0.0
    %206 = vmatpush1.msra.mxu0 0.0
    %207 = vmatprep.subr.mxu0 0.0
    %208 = vmatpush1.msra.mxu0 0.0
    %209 = vmatprep.subr.mxu0 0.0
    %210 = vmatpush1.msra.mxu0 0.0
    %211 = vmatprep.subr.mxu0 0.0
    %212 = vmatpush1.msra.mxu0 0.0
    %213 = vmatprep.subr.mxu0 0.0
    %214 = vmatpush1.msra.mxu0 0.0
    %215 = vmatprep.subr.mxu0 0.0
    %216 = vmatpush1.msra.mxu0 0.0
    %217 = vmatprep.subr.mxu0 0.0
    %218 = vmatpush1.msra.mxu0 0.0
    %219 = vmatprep.subr.mxu0 0.0
    %220 = vmatpush1.msra.mxu0 0.0
    %221 = vmatprep.subr.mxu0 0.0
    %222 = vmatpush1.msra.mxu0 0.0
    %223 = vmatprep.subr.mxu0 0.0
    %224 = vmatpush1.msra.mxu0 0.0
    %225 = vmatprep.subr.mxu0 0.0
    %226 = vmatpush1.msra.mxu0 0.0
    %227 = vmatprep.subr.mxu0 0.0
    %228 = vmatpush1.msra.mxu0 0.0
    %229 = vmatprep.subr.mxu0 0.0
    %230 = vmatpush1.msra.mxu0 0.0
    %231 = vmatprep.subr.mxu0 0.0
    %232 = vmatpush1.msra.mxu0 0.0
    %233 = vmatprep.subr.mxu0 0.0
    %234 = vmatpush1.msra.mxu0 0.0
    %235 = vmatprep.subr.mxu0 0.0
    %236 = vmatpush1.msra.mxu0 0.0
    %237 = vmatprep.subr.mxu0 0.0
    %238 = vmatpush1.msra.mxu0 0.0
    %239 = vmatprep.subr.mxu0 0.0
    %240 = vmatpush1.msra.mxu0 0.0
    %241 = vmatprep.subr.mxu0 0.0
    %242 = vmatpush1.msra.mxu0 0.0
    %243 = vmatprep.subr.mxu0 0.0
    %244 = vmatpush1.msra.mxu0 0.0
    %245 = vmatprep.subr.mxu0 0.0
    %246 = vmatpush1.msra.mxu0 0.0
    %247 = vmatprep.subr.mxu0 0.0
    %248 = vmatpush1.msra.mxu0 0.0
    %249 = vmatprep.subr.mxu0 0.0
    %250 = vmatpush1.msra.mxu0 0.0
    %251 = vmatprep.mubr.f32.mxu0 0.0
    %252 = vmatmul.mubr.f32.gmra.mrb[0].mxu0 %v182
    %v253 = vpop.f32.mrb[0].mxu0
    %v254 = vadd.f32 %v173, %v253
    %v255 = vpop.f32.mrb[0].mxu0
    %v256 = vadd.f32 %v173, %v255
    %257 = vmatprep.mubr.f32.mxu0 0.0
    %258 = vmatmul.mubr.f32.gmra.mrb[0].mxu0 %v185
    %v259 = vpop.f32.mrb[0].mxu0
    %v260 = vadd.f32 %v178, %v259
    %v261 = vpop.f32.mrb[0].mxu0
    %v262 = vadd.f32 %v178, %v261
    %263 = vdwg.mxu0
    %v264 = vmax.f32 %v254, 0.0
    %v265 = vmax.f32 %v256, 0.0
    %v266 = vmax.f32 %v260, 0.0
    %v267 = vmax.f32 %v262, 0.0
    %268 = vst [vmem:[#allocation7] sm:$0xff] %v264
    %269 = vst [vmem:[#allocation7 + $0x8] sm:$0xff] %v265
    %270 = vst [vmem:[#allocation7 + $0x10] sm:$0xff] %v266
    %271 = vst [vmem:[#allocation7 + $0x18] sm:$0xff] %v267
    // Predicated region
    $region26: #{tpu_custom_call.1} parent=1 // pred_check
      _
    $region27: #{tpu_custom_call.1} parent=1 // pred_check_branch
      %273 = sbr.rel (0) target = $region29
    $region28: #{tpu_custom_call.1} parent=1 // pred_region
      %s275 = ssub.s32 512, 512
      %276 = vsyncadd [#allocation4], %s275
      %s277 = sshll.u32 [#allocation7], 4
      %s278 = int_to_ptr.vmem [resolvable:$true] %s277
      %283 = dma.vmem_to_hbm [thread:$0]  %s278, 512, %s4, [#allocation4], 256, 256, 16
    $region29: #{tpu_custom_call.1} parent=1 // pred_fallthru
      _
    // Predicated region
    $region30: #{tpu_custom_call.1} parent=1 // pred_check
      _
    $region31: #{tpu_custom_call.1} parent=1 // pred_check_branch
      %285 = sbr.rel (0) target = $region33
    $region32: #{tpu_custom_call.1} parent=1 // pred_region
      %286 = dma.done [#allocation4], 512
    $region33: #{tpu_custom_call.1} parent=1 // pred_fallthru
      _
    %287 = vsyncpa [#allocation3], 1
    %288 = vsyncpa [#allocation6], 1
    %289 = vsyncpa [#allocation4], 1

</llo_original>
